<compile_context>
chip_gen: v7x
topology: tpu7x:2x2x1
jax: 0.10.0
libtpu: 0.0.40
codegen_flags: <defaults>
</compile_context>

<pallas_src>
import functools

import jax
import jax.numpy as jnp
from jax.experimental import pallas as pl
from jax.experimental.pallas import tpu as pltpu

_LANE = 128          # lane width: last dim multiple for unmasked vst
_SUBLANE_BF16 = 16   # bf16 packs 16 rows per vreg sublane


def _round_up(n, m):
    return ((n + m - 1) // m) * m


def _mlp_fused_kernel(x_ref, w_ref, b_ref, o_ref, *, num_layers):
    """Fused MLP forward, everything resident in VMEM/vregs.

    x_ref: fp32 [Mp, Dp]          lane/sublane-padded activations
    w_ref: bf16 [L, Dp, Dp]       stacked, zero-padded, pre-cast weights
    b_ref: fp32 [L, 1, Dp]        stacked, zero-padded biases
    o_ref: fp32 [Mp, Dp]
    """
    h = x_ref[...]  # fp32, stays VMEM/vreg resident across all layers
    for i in range(num_layers):
        w = w_ref[i]        # bf16 [Dp, Dp]
        b = b_ref[i]        # fp32 [1, Dp]
        if i < num_layers - 1:
            # Hidden layers: bf16 MXU operands, fp32 accumulation + epilogue.
            acc = jnp.dot(h.astype(jnp.bfloat16), w,
                          preferred_element_type=jnp.float32)
            h = jnp.maximum(acc + b, 0.0)
        else:
            # Final (logit) layer: keep the matmul in fp32 — essentially free
            # at these sizes and avoids compounding activation-quant error.
            acc = jnp.dot(h, w.astype(jnp.float32),
                          preferred_element_type=jnp.float32)
            h = acc + b
    o_ref[...] = h.astype(o_ref.dtype)


def prepare_params(params):
    """One-time prep: pad, cast and stack the per-layer (W, b) pairs.

    Returns (w_stack bf16 [L, Dp, Dp], b_stack f32 [L, 1, Dp], out_dim).
    Call once (e.g. at load time); the result is what mlp_forward consumes.
    """
    in_dim = params[0][0].shape[0]
    dims = [in_dim] + [w.shape[1] for (w, _) in params]
    Dp = _round_up(max(dims), _LANE)

    w_list, b_list = [], []
    for (w, b) in params:
        wp = jnp.pad(w.astype(jnp.bfloat16),
                     ((0, Dp - w.shape[0]), (0, Dp - w.shape[1])))
        bp = jnp.pad(b.astype(jnp.float32),
                     ((0, Dp - b.shape[0]),)).reshape(1, Dp)
        w_list.append(wp)
        b_list.append(bp)
    return jnp.stack(w_list), jnp.stack(b_list), dims[-1]


@functools.partial(jax.jit, static_argnames=("out_dim",))
def mlp_forward(x, w_stack, b_stack, out_dim):
    """Forward pass of the MLP: ReLU on every layer except the last."""
    num_layers = w_stack.shape[0]
    Dp = w_stack.shape[2]
    M, in_dim = x.shape
    Mp = _round_up(M, _SUBLANE_BF16)

    # Only the activation is padded per call (rows to 16, features to Dp).
    x_p = jnp.pad(x.astype(jnp.float32), ((0, Mp - M), (0, Dp - in_dim)))

    kernel = functools.partial(_mlp_fused_kernel, num_layers=num_layers)

    out_p = pl.pallas_call(
        kernel,
        out_shape=jax.ShapeDtypeStruct((Mp, Dp), jnp.float32),
        in_specs=[pl.BlockSpec(memory_space=pltpu.MemorySpace.VMEM)
                  for _ in range(3)],
        out_specs=pl.BlockSpec(memory_space=pltpu.MemorySpace.VMEM),
    )(x_p, w_stack, b_stack)

    # Slice away row/lane padding.
    return out_p[:M, :out_dim]


def init_mlp_params(key, input_dim, hidden_dim, output_dim, num_layers):
    """Deterministic parameter init matching nn.Linear shapes (W stored transposed)."""
    h = [hidden_dim] * (num_layers - 1)
    dims_in = [input_dim] + h
    dims_out = h + [output_dim]
    params = []
    for n_in, n_out in zip(dims_in, dims_out):
        key, kw, kb = jax.random.split(key, 3)
        bound = 1.0 / (n_in ** 0.5)  # PyTorch nn.Linear default uniform bound
        w = jax.random.uniform(kw, (n_in, n_out), jnp.float32, -bound, bound)
        b = jax.random.uniform(kb, (n_out,), jnp.float32, -bound, bound)
        params.append((w, b))
    return params


if __name__ == "__main__":
    key = jax.random.PRNGKey(0)
    k_x, k_p = jax.random.split(key)

    batch = 8
    input_dim = 32
    hidden_dim = 32
    output_dim = 16
    num_layers = 3

    x = jax.random.normal(k_x, (batch, input_dim), jnp.float32)
    params = init_mlp_params(k_p, input_dim, hidden_dim, output_dim, num_layers)

    # One-time prep (padding / bf16 cast / stacking) — NOT in the per-call path.
    w_stack, b_stack, out_dim = prepare_params(params)
    w_stack, b_stack = jax.block_until_ready((w_stack, b_stack))

    out = mlp_forward(x, w_stack, b_stack, out_dim)
    out = jax.block_until_ready(out)

    # Reference in plain fp32 JAX (no Pallas).  Tolerance loosened slightly
    # because hidden layers use bf16 MXU operands (fp32 accumulation/epilogue).
    ref = x
    for i, (w, b) in enumerate(params):
        ref = ref @ w + b
        if i < num_layers - 1:
            ref = jnp.maximum(ref, 0.0)

    assert out.shape == (batch, output_dim)
    assert jnp.allclose(out, ref, atol=2e-2, rtol=2e-2), (
        f"max abs err = {float(jnp.max(jnp.abs(out - ref)))}")

    print("KERNEL_OK")
</pallas_src>

<mosaic_0001>
module attributes {stable_mosaic.version = 11 : i64} {
  func.func @_mlp_fused_kernel(%arg0: memref<16x128xf32, #tpu.memory_space<vmem>>, %arg1: memref<3x128x128xbf16, #tpu.memory_space<vmem>>, %arg2: memref<3x1x128xf32, #tpu.memory_space<vmem>>, %arg3: memref<16x128xf32, #tpu.memory_space<vmem>>) attributes {dimension_semantics = [], scalar_prefetch = 0 : i64, scratch_operands = 0 : i64, tpu.core_type = #tpu.core_type<tc>} {
    %c0 = arith.constant 0 : index
    %c0_0 = arith.constant 0 : index
    %0 = vector.load %arg0[%c0, %c0_0] : memref<16x128xf32, #tpu.memory_space<vmem>>, vector<16x128xf32>
    %c0_1 = arith.constant 0 : index
    %c0_2 = arith.constant 0 : index
    %c0_3 = arith.constant 0 : index
    %1 = vector.load %arg1[%c0_1, %c0_2, %c0_3] : memref<3x128x128xbf16, #tpu.memory_space<vmem>>, vector<1x128x128xbf16>
    %2 = vector.shape_cast %1 : vector<1x128x128xbf16> to vector<128x128xbf16>
    %c0_4 = arith.constant 0 : index
    %c0_5 = arith.constant 0 : index
    %c0_6 = arith.constant 0 : index
    %3 = vector.load %arg2[%c0_4, %c0_5, %c0_6] : memref<3x1x128xf32, #tpu.memory_space<vmem>>, vector<1x1x128xf32>
    %4 = vector.shape_cast %3 : vector<1x1x128xf32> to vector<1x128xf32>
    %5 = arith.truncf %0 : vector<16x128xf32> to vector<16x128xbf16>
    %cst = arith.constant dense<0.000000e+00> : vector<16x128xf32>
    %6 = tpu.matmul %5, %2, %cst {dimension_numbers = #tpu.dot_dimension_numbers<[1], [0], [0], [1], [0, 0, 1, 1], [], []>} : vector<16x128xbf16>, vector<128x128xbf16>, vector<16x128xf32> -> vector<16x128xf32>
    %7 = vector.broadcast %4 : vector<1x128xf32> to vector<16x128xf32>
    %8 = arith.addf %6, %7 : vector<16x128xf32>
    %cst_7 = arith.constant 0.000000e+00 : f32
    %9 = vector.broadcast %cst_7 : f32 to vector<16x128xf32>
    %10 = arith.maximumf %8, %9 : vector<16x128xf32>
    %c1 = arith.constant 1 : index
    %c0_8 = arith.constant 0 : index
    %c0_9 = arith.constant 0 : index
    %11 = vector.load %arg1[%c1, %c0_8, %c0_9] : memref<3x128x128xbf16, #tpu.memory_space<vmem>>, vector<1x128x128xbf16>
    %12 = vector.shape_cast %11 : vector<1x128x128xbf16> to vector<128x128xbf16>
    %c1_10 = arith.constant 1 : index
    %c0_11 = arith.constant 0 : index
    %c0_12 = arith.constant 0 : index
    %13 = vector.load %arg2[%c1_10, %c0_11, %c0_12] : memref<3x1x128xf32, #tpu.memory_space<vmem>>, vector<1x1x128xf32>
    %14 = vector.shape_cast %13 : vector<1x1x128xf32> to vector<1x128xf32>
    %15 = arith.truncf %10 : vector<16x128xf32> to vector<16x128xbf16>
    %cst_13 = arith.constant dense<0.000000e+00> : vector<16x128xf32>
    %16 = tpu.matmul %15, %12, %cst_13 {dimension_numbers = #tpu.dot_dimension_numbers<[1], [0], [0], [1], [0, 0, 1, 1], [], []>} : vector<16x128xbf16>, vector<128x128xbf16>, vector<16x128xf32> -> vector<16x128xf32>
    %17 = vector.broadcast %14 : vector<1x128xf32> to vector<16x128xf32>
    %18 = arith.addf %16, %17 : vector<16x128xf32>
    %cst_14 = arith.constant 0.000000e+00 : f32
    %19 = vector.broadcast %cst_14 : f32 to vector<16x128xf32>
    %20 = arith.maximumf %18, %19 : vector<16x128xf32>
    %c2 = arith.constant 2 : index
    %c0_15 = arith.constant 0 : index
    %c0_16 = arith.constant 0 : index
    %21 = vector.load %arg1[%c2, %c0_15, %c0_16] : memref<3x128x128xbf16, #tpu.memory_space<vmem>>, vector<1x128x128xbf16>
    %22 = vector.shape_cast %21 : vector<1x128x128xbf16> to vector<128x128xbf16>
    %c2_17 = arith.constant 2 : index
    %c0_18 = arith.constant 0 : index
    %c0_19 = arith.constant 0 : index
    %23 = vector.load %arg2[%c2_17, %c0_18, %c0_19] : memref<3x1x128xf32, #tpu.memory_space<vmem>>, vector<1x1x128xf32>
    %24 = vector.shape_cast %23 : vector<1x1x128xf32> to vector<1x128xf32>
    %25 = arith.extf %22 : vector<128x128xbf16> to vector<128x128xf32>
    %cst_20 = arith.constant dense<0.000000e+00> : vector<16x128xf32>
    %26 = tpu.matmul %20, %25, %cst_20 {dimension_numbers = #tpu.dot_dimension_numbers<[1], [0], [0], [1], [0, 0, 1, 1], [], []>} : vector<16x128xf32>, vector<128x128xf32>, vector<16x128xf32> -> vector<16x128xf32>
    %27 = vector.broadcast %24 : vector<1x128xf32> to vector<16x128xf32>
    %28 = arith.addf %26, %27 : vector<16x128xf32>
    %c0_21 = arith.constant 0 : index
    %c0_22 = arith.constant 0 : index
    %29 = vector.load %arg3[%c0_21, %c0_22] : memref<16x128xf32, #tpu.memory_space<vmem>>, vector<16x128xf32>
    tpu.vector_store %arg3[%c0_21, %c0_22], %28 {strides = array<i32>} : memref<16x128xf32, #tpu.memory_space<vmem>>, vector<16x128xf32>,
    return
  }
}

</mosaic_0001>

<llo_original>
// kernel: mlp_forward.1
$region0: #{mlp_forward.1}
  #allocation0 [shape = 'u32[]', space=smem, size = 0x4, offset = 0x4, fixed_abs, tag = 'smem constant byte address 0x4 - core index']
  #allocation1 [shape = 'u32[144,128]{1,0:T(1,128)}', space=vmem, size = 0x12000, scoped, tag = 'internal scratch']
  %s0 = inlined_call_operand.vmem [shape: f32[16,128], index: 0, kind: input, shape index: {}]
  %s1 = inlined_call_operand.hbm [shape: bf16[3,128,128], index: 1, kind: input, shape index: {}]
  %s2 = inlined_call_operand.vmem [shape: f32[3,1,128], index: 2, kind: input, shape index: {}]
  %s3 = inlined_call_operand.vmem [shape: f32[16,128], index: 3, kind: output, shape index: {}]
  %s4 = sld [smem:[#allocation0]]
  $region26: #{mlp_forward.1} parent=0
    _
  %s6 = ssub.s32 1, %s4
  %s7 = scalar_select 0, %s6, %s4
  $region1: #{mlp_forward.1} parent=0
    #allocation2 [shape = 'u8[98304]{0}', space=vmem, size = 0x18000, scoped, tag = 'input window, operand 1, single buffered']
    #allocation3 [shape = 's32[1]{0}', space=sflag, size = 0x4, scoped, tag = 'scoped memory for mlp_forward.1']
    %8 = vsyncpa [#allocation3], 0
    // Predicated region
    $region2: #{mlp_forward.1} parent=1 // pred_check
      _
    $region3: #{mlp_forward.1} parent=1 // pred_check_branch
      %10 = sbr.rel (0) target = $region5
    $region4: #{mlp_forward.1} parent=1 // pred_region
      _
    $region5: #{mlp_forward.1} parent=1 // pred_fallthru
      _
    // Predicated region
    $region6: #{mlp_forward.1} parent=1 // pred_check
      _
    $region7: #{mlp_forward.1} parent=1 // pred_check_branch
      %12 = sbr.rel (0) target = $region9
    $region8: #{mlp_forward.1} parent=1 // pred_region
      %s14 = ssub.s32 3072, 3072
      %15 = vsyncadd [#allocation3], %s14
      %s16 = sshll.u32 [#allocation2], 4
      %s17 = int_to_ptr.vmem [resolvable:$true] %s16
      %22 = dma.hbm_to_vmem [thread:$0]  %s1, 3072, %s17, [#allocation3], 64, 64, 4
    $region9: #{mlp_forward.1} parent=1 // pred_fallthru
      _
    // Predicated region
    $region10: #{mlp_forward.1} parent=1 // pred_check
      _
    $region11: #{mlp_forward.1} parent=1 // pred_check_branch
      %24 = sbr.rel (0) target = $region13
    $region12: #{mlp_forward.1} parent=1 // pred_region
      _
    $region13: #{mlp_forward.1} parent=1 // pred_fallthru
      _
    // Predicated region
    $region14: #{mlp_forward.1} parent=1 // pred_check
      _
    $region15: #{mlp_forward.1} parent=1 // pred_check_branch
      %26 = sbr.rel (0) target = $region17
    $region16: #{mlp_forward.1} parent=1 // pred_region
      %27 = dma.done [#allocation3], 3072
    $region17: #{mlp_forward.1} parent=1 // pred_fallthru
      _
    %v29 = vld [vmem:[%s0] sm:$0xff]
    %v30 = vld [vmem:[%s0 + $0x8] sm:$0xff]
    %v31 = vld [vmem:[#allocation2] sm:$0xf]
    %v32 = vld [vmem:[#allocation2 + $0x4] sm:$0xf]
    %v33 = vld [vmem:[#allocation2 + $0x8] sm:$0xf]
    %v34 = vld [vmem:[#allocation2 + $0xc] sm:$0xf]
    %v35 = vld [vmem:[#allocation2 + $0x10] sm:$0xf]
    %v36 = vld [vmem:[#allocation2 + $0x14] sm:$0xf]
    %v37 = vld [vmem:[#allocation2 + $0x18] sm:$0xf]
    %v38 = vld [vmem:[#allocation2 + $0x1c] sm:$0xf]
    %v39 = vld [vmem:[#allocation2 + $0x20] sm:$0xf]
    %v40 = vld [vmem:[#allocation2 + $0x24] sm:$0xf]
    %v41 = vld [vmem:[#allocation2 + $0x28] sm:$0xf]
    %v42 = vld [vmem:[#allocation2 + $0x2c] sm:$0xf]
    %v43 = vld [vmem:[#allocation2 + $0x30] sm:$0xf]
    %v44 = vld [vmem:[#allocation2 + $0x34] sm:$0xf]
    %v45 = vld [vmem:[#allocation2 + $0x38] sm:$0xf]
    %v46 = vld [vmem:[#allocation2 + $0x3c] sm:$0xf]
    %v47 = vld [vmem:[%s2] sm:$0x1]
    %v48 = vpack.c.bf16 %v30, %v29
    %v50 = vlaneseq
    %v51 = vshrl.u32 %v50, 7
    %v52 = vsub.s32 0, %v51
    %v53 = vrot.slane %v47, %v52
    %v71 = vunpack.c.l.b16 %v31
    %v72 = vunpack.c.l.b16 %v32
    %v73 = vunpack.c.l.b16 %v33
    %v74 = vunpack.c.l.b16 %v34
    %v75 = vunpack.c.l.b16 %v35
    %v76 = vunpack.c.l.b16 %v36
    %v77 = vunpack.c.l.b16 %v37
    %v78 = vunpack.c.l.b16 %v38
    %v79 = vunpack.c.l.b16 %v39
    %v80 = vunpack.c.l.b16 %v40
    %v81 = vunpack.c.l.b16 %v41
    %v82 = vunpack.c.l.b16 %v42
    %v83 = vunpack.c.l.b16 %v43
    %v84 = vunpack.c.l.b16 %v44
    %v85 = vunpack.c.l.b16 %v45
    %v86 = vunpack.c.l.b16 %v46
    %v87 = vpack.c.b16 %v72, %v71
    %v88 = vpack.c.b16 %v74, %v73
    %v89 = vpack.c.b16 %v76, %v75
    %v90 = vpack.c.b16 %v78, %v77
    %v91 = vpack.c.b16 %v80, %v79
    %v92 = vpack.c.b16 %v82, %v81
    %v93 = vpack.c.b16 %v84, %v83
    %v94 = vpack.c.b16 %v86, %v85
    %103 = vmatprep.subr.bf16.mxu0 0
    %104 = vmatpush1.bf16.msra.mxu0 %v87
    %105 = vmatprep.subr.bf16.mxu0 0
    %106 = vmatpush1.bf16.msra.mxu0 %v88
    %107 = vmatprep.subr.bf16.mxu0 0
    %108 = vmatpush1.bf16.msra.mxu0 %v89
    %109 = vmatprep.subr.bf16.mxu0 0
    %110 = vmatpush1.bf16.msra.mxu0 %v90
    %111 = vmatprep.subr.bf16.mxu0 0
    %112 = vmatpush1.bf16.msra.mxu0 %v91
    %113 = vmatprep.subr.bf16.mxu0 0
    %114 = vmatpush1.bf16.msra.mxu0 %v92
    %115 = vmatprep.subr.bf16.mxu0 0
    %116 = vmatpush1.bf16.msra.mxu0 %v93
    %117 = vmatprep.subr.bf16.mxu0 0
    %118 = vmatpush1.bf16.msra.mxu0 %v94
    %119 = vmatprep.subr.bf16.mxu0 0
    %120 = vmatpush1.bf16.msra.mxu0 0
    %121 = vmatprep.subr.bf16.mxu0 0
    %122 = vmatpush1.bf16.msra.mxu0 0
    %123 = vmatprep.subr.bf16.mxu0 0
    %124 = vmatpush1.bf16.msra.mxu0 0
    %125 = vmatprep.subr.bf16.mxu0 0
    %126 = vmatpush1.bf16.msra.mxu0 0
    %127 = vmatprep.subr.bf16.mxu0 0
    %128 = vmatpush1.bf16.msra.mxu0 0
    %129 = vmatprep.subr.bf16.mxu0 0
    %130 = vmatpush1.bf16.msra.mxu0 0
    %131 = vmatprep.subr.bf16.mxu0 0
    %132 = vmatpush1.bf16.msra.mxu0 0
    %133 = vmatprep.subr.bf16.mxu0 0
    %134 = vmatpush1.bf16.msra.mxu0 0
    %135 = vmatprep.mubr.bf16.mxu0 0
    %136 = vmatmul.mubr.bf16.gmra.mrb[0].mxu0 %v48
    %v137 = vpop.f32.mrb[0].mxu0
    %v138 = vadd.f32 %v53, %v137
    %v139 = vpop.f32.mrb[0].mxu0
    %v140 = vpop.f32.mrb[0].mxu0
    %v141 = vadd.f32 %v53, %v140
    %v142 = vpop.f32.mrb[0].mxu0
    %143 = vdwg.mxu0
    %v144 = vmax.f32 %v138, 0.0
    %v145 = vmax.f32 %v141, 0.0
    %s146 = scalar_lea.vmem [#allocation2], 64
    %v147 = vld [vmem:[%s146] sm:$0xf]
    %v148 = vld [vmem:[%s146 + $0x4] sm:$0xf]
    %v149 = vld [vmem:[%s146 + $0x8] sm:$0xf]
    %v150 = vld [vmem:[%s146 + $0xc] sm:$0xf]
    %v151 = vld [vmem:[%s146 + $0x10] sm:$0xf]
    %v152 = vld [vmem:[%s146 + $0x14] sm:$0xf]
    %v153 = vld [vmem:[%s146 + $0x18] sm:$0xf]
    %v154 = vld [vmem:[%s146 + $0x1c] sm:$0xf]
    %v155 = vld [vmem:[%s146 + $0x20] sm:$0xf]
    %v156 = vld [vmem:[%s146 + $0x24] sm:$0xf]
    %v157 = vld [vmem:[%s146 + $0x28] sm:$0xf]
    %v158 = vld [vmem:[%s146 + $0x2c] sm:$0xf]
    %v159 = vld [vmem:[%s146 + $0x30] sm:$0xf]
    %v160 = vld [vmem:[%s146 + $0x34] sm:$0xf]
    %v161 = vld [vmem:[%s146 + $0x38] sm:$0xf]
    %v162 = vld [vmem:[%s146 + $0x3c] sm:$0xf]
    %s163 = scalar_lea.vmem %s2, 1
    %v164 = vld [vmem:[%s163] sm:$0x1]
    %v165 = vpack.c.bf16 %v145, %v144
    %v167 = vlaneseq
    %v168 = vshrl.u32 %v167, 7
    %v169 = vsub.s32 0, %v168
    %v170 = vrot.slane %v164, %v169
    %v188 = vunpack.c.l.b16 %v147
    %v189 = vunpack.c.l.b16 %v148
    %v190 = vunpack.c.l.b16 %v149
    %v191 = vunpack.c.l.b16 %v150
    %v192 = vunpack.c.l.b16 %v151
    %v193 = vunpack.c.l.b16 %v152
    %v194 = vunpack.c.l.b16 %v153
    %v195 = vunpack.c.l.b16 %v154
    %v196 = vunpack.c.l.b16 %v155
    %v197 = vunpack.c.l.b16 %v156
    %v198 = vunpack.c.l.b16 %v157
    %v199 = vunpack.c.l.b16 %v158
    %v200 = vunpack.c.l.b16 %v159
    %v201 = vunpack.c.l.b16 %v160
    %v202 = vunpack.c.l.b16 %v161
    %v203 = vunpack.c.l.b16 %v162
    %v204 = vpack.c.b16 %v189, %v188
    %v205 = vpack.c.b16 %v191, %v190
    %v206 = vpack.c.b16 %v193, %v192
    %v207 = vpack.c.b16 %v195, %v194
    %v208 = vpack.c.b16 %v197, %v196
    %v209 = vpack.c.b16 %v199, %v198
    %v210 = vpack.c.b16 %v201, %v200
    %v211 = vpack.c.b16 %v203, %v202
    %220 = vmatprep.subr.bf16.mxu0 0
    %221 = vmatpush1.bf16.msra.mxu0 %v204
    %222 = vmatprep.subr.bf16.mxu0 0
    %223 = vmatpush1.bf16.msra.mxu0 %v205
    %224 = vmatprep.subr.bf16.mxu0 0
    %225 = vmatpush1.bf16.msra.mxu0 %v206
    %226 = vmatprep.subr.bf16.mxu0 0
    %227 = vmatpush1.bf16.msra.mxu0 %v207
    %228 = vmatprep.subr.bf16.mxu0 0
    %229 = vmatpush1.bf16.msra.mxu0 %v208
    %230 = vmatprep.subr.bf16.mxu0 0
    %231 = vmatpush1.bf16.msra.mxu0 %v209
    %232 = vmatprep.subr.bf16.mxu0 0
    %233 = vmatpush1.bf16.msra.mxu0 %v210
    %234 = vmatprep.subr.bf16.mxu0 0
    %235 = vmatpush1.bf16.msra.mxu0 %v211
    %236 = vmatprep.subr.bf16.mxu0 0
    %237 = vmatpush1.bf16.msra.mxu0 0
    %238 = vmatprep.subr.bf16.mxu0 0
    %239 = vmatpush1.bf16.msra.mxu0 0
    %240 = vmatprep.subr.bf16.mxu0 0
    %241 = vmatpush1.bf16.msra.mxu0 0
    %242 = vmatprep.subr.bf16.mxu0 0
    %243 = vmatpush1.bf16.msra.mxu0 0
    %244 = vmatprep.subr.bf16.mxu0 0
    %245 = vmatpush1.bf16.msra.mxu0 0
    %246 = vmatprep.subr.bf16.mxu0 0
    %247 = vmatpush1.bf16.msra.mxu0 0
    %248 = vmatprep.subr.bf16.mxu0 0
    %249 = vmatpush1.bf16.msra.mxu0 0
    %250 = vmatprep.subr.bf16.mxu0 0
    %251 = vmatpush1.bf16.msra.mxu0 0
    %252 = vmatprep.mubr.bf16.mxu0 0
    %253 = vmatmul.mubr.bf16.gmra.mrb[0].mxu0 %v165
    %v254 = vpop.f32.mrb[0].mxu0
    %v255 = vadd.f32 %v170, %v254
    %v256 = vpop.f32.mrb[0].mxu0
    %v257 = vpop.f32.mrb[0].mxu0
    %v258 = vadd.f32 %v170, %v257
    %v259 = vpop.f32.mrb[0].mxu0
    %260 = vdwg.mxu0
    %v261 = vmax.f32 %v255, 0.0
    %v262 = vmax.f32 %v258, 0.0
    %s263 = scalar_lea.vmem [#allocation2], 128
    %v264 = vld [vmem:[%s263] sm:$0xf]
    %v265 = vld [vmem:[%s263 + $0x4] sm:$0xf]
    %v266 = vld [vmem:[%s263 + $0x8] sm:$0xf]
    %v267 = vld [vmem:[%s263 + $0xc] sm:$0xf]
    %v268 = vld [vmem:[%s263 + $0x10] sm:$0xf]
    %v269 = vld [vmem:[%s263 + $0x14] sm:$0xf]
    %v270 = vld [vmem:[%s263 + $0x18] sm:$0xf]
    %v271 = vld [vmem:[%s263 + $0x1c] sm:$0xf]
    %v272 = vld [vmem:[%s263 + $0x20] sm:$0xf]
    %v273 = vld [vmem:[%s263 + $0x24] sm:$0xf]
    %v274 = vld [vmem:[%s263 + $0x28] sm:$0xf]
    %v275 = vld [vmem:[%s263 + $0x2c] sm:$0xf]
    %v276 = vld [vmem:[%s263 + $0x30] sm:$0xf]
    %v277 = vld [vmem:[%s263 + $0x34] sm:$0xf]
    %v278 = vld [vmem:[%s263 + $0x38] sm:$0xf]
    %v279 = vld [vmem:[%s263 + $0x3c] sm:$0xf]
    %s280 = scalar_lea.vmem %s2, 2
    %v281 = vld [vmem:[%s280] sm:$0x1]
    %v282 = vunpack.c.l.bf16 %v264
    %v283 = vunpack.c.l.bf16 %v265
    %v284 = vunpack.c.l.bf16 %v266
    %v285 = vunpack.c.l.bf16 %v267
    %v286 = vunpack.c.l.bf16 %v268
    %v287 = vunpack.c.l.bf16 %v269
    %v288 = vunpack.c.l.bf16 %v270
    %v289 = vunpack.c.l.bf16 %v271
    %v290 = vunpack.c.l.bf16 %v272
    %v291 = vunpack.c.l.bf16 %v273
    %v292 = vunpack.c.l.bf16 %v274
    %v293 = vunpack.c.l.bf16 %v275
    %v294 = vunpack.c.l.bf16 %v276
    %v295 = vunpack.c.l.bf16 %v277
    %v296 = vunpack.c.l.bf16 %v278
    %v297 = vunpack.c.l.bf16 %v279
    %v299 = vlaneseq
    %v300 = vshrl.u32 %v299, 7
    %v301 = vsub.s32 0, %v300
    %v302 = vrot.slane %v281, %v301
    %304 = vmatprep.subr.mxu0 0.0
    %305 = vmatpush1.msra.mxu0 %v282
    %306 = vmatprep.subr.mxu0 0.0
    %307 = vmatpush1.msra.mxu0 %v283
    %308 = vmatprep.subr.mxu0 0.0
    %309 = vmatpush1.msra.mxu0 %v284
    %310 = vmatprep.subr.mxu0 0.0
    %311 = vmatpush1.msra.mxu0 %v285
    %312 = vmatprep.subr.mxu0 0.0
    %313 = vmatpush1.msra.mxu0 %v286
    %314 = vmatprep.subr.mxu0 0.0
    %315 = vmatpush1.msra.mxu0 %v287
    %316 = vmatprep.subr.mxu0 0.0
    %317 = vmatpush1.msra.mxu0 %v288
    %318 = vmatprep.subr.mxu0 0.0
    %319 = vmatpush1.msra.mxu0 %v289
    %320 = vmatprep.subr.mxu0 0.0
    %321 = vmatpush1.msra.mxu0 %v290
    %322 = vmatprep.subr.mxu0 0.0
    %323 = vmatpush1.msra.mxu0 %v291
    %324 = vmatprep.subr.mxu0 0.0
    %325 = vmatpush1.msra.mxu0 %v292
    %326 = vmatprep.subr.mxu0 0.0
    %327 = vmatpush1.msra.mxu0 %v293
    %328 = vmatprep.subr.mxu0 0.0
    %329 = vmatpush1.msra.mxu0 %v294
    %330 = vmatprep.subr.mxu0 0.0
    %331 = vmatpush1.msra.mxu0 %v295
    %332 = vmatprep.subr.mxu0 0.0
    %333 = vmatpush1.msra.mxu0 %v296
    %334 = vmatprep.subr.mxu0 0.0
    %335 = vmatpush1.msra.mxu0 %v297
    %336 = vmatprep.subr.mxu0 0.0
    %337 = vmatpush1.msra.mxu0 0.0
    %338 = vmatprep.subr.mxu0 0.0
    %339 = vmatpush1.msra.mxu0 0.0
    %340 = vmatprep.subr.mxu0 0.0
    %341 = vmatpush1.msra.mxu0 0.0
    %342 = vmatprep.subr.mxu0 0.0
    %343 = vmatpush1.msra.mxu0 0.0
    %344 = vmatprep.subr.mxu0 0.0
    %345 = vmatpush1.msra.mxu0 0.0
    %346 = vmatprep.subr.mxu0 0.0
    %347 = vmatpush1.msra.mxu0 0.0
    %348 = vmatprep.subr.mxu0 0.0
    %349 = vmatpush1.msra.mxu0 0.0
    %350 = vmatprep.subr.mxu0 0.0
    %351 = vmatpush1.msra.mxu0 0.0
    %352 = vmatprep.subr.mxu0 0.0
    %353 = vmatpush1.msra.mxu0 0.0
    %354 = vmatprep.subr.mxu0 0.0
    %355 = vmatpush1.msra.mxu0 0.0
    %356 = vmatprep.subr.mxu0 0.0
    %357 = vmatpush1.msra.mxu0 0.0
    %358 = vmatprep.subr.mxu0 0.0
    %359 = vmatpush1.msra.mxu0 0.0
    %360 = vmatprep.subr.mxu0 0.0
    %361 = vmatpush1.msra.mxu0 0.0
    %362 = vmatprep.subr.mxu0 0.0
    %363 = vmatpush1.msra.mxu0 0.0
    %364 = vmatprep.subr.mxu0 0.0
    %365 = vmatpush1.msra.mxu0 0.0
    %366 = vmatprep.subr.mxu0 0.0
    %367 = vmatpush1.msra.mxu0 0.0
    %368 = vmatprep.mubr.f32.mxu0 0.0
    %369 = vmatmul.mubr.f32.gmra.mrb[0].mxu0 %v261
    %v370 = vpop.f32.mrb[0].mxu0
    %v371 = vadd.f32 %v302, %v370
    %v372 = vpop.f32.mrb[0].mxu0
    %373 = vmatprep.mubr.f32.mxu0 0.0
    %374 = vmatmul.mubr.f32.gmra.mrb[0].mxu0 %v262
    %v375 = vpop.f32.mrb[0].mxu0
    %v376 = vadd.f32 %v302, %v375
    %v377 = vpop.f32.mrb[0].mxu0
    %378 = vdwg.mxu0
    %379 = vst [vmem:[%s3] sm:$0xff] %v371
    %380 = vst [vmem:[%s3 + $0x8] sm:$0xff] %v376
    // Predicated region
    $region18: #{mlp_forward.1} parent=1 // pred_check
      _
    $region19: #{mlp_forward.1} parent=1 // pred_check_branch
      %382 = sbr.rel (0) target = $region21
    $region20: #{mlp_forward.1} parent=1 // pred_region
      _
    $region21: #{mlp_forward.1} parent=1 // pred_fallthru
      _
    // Predicated region
    $region22: #{mlp_forward.1} parent=1 // pred_check
      _
    $region23: #{mlp_forward.1} parent=1 // pred_check_branch
      %384 = sbr.rel (0) target = $region25
    $region24: #{mlp_forward.1} parent=1 // pred_region
      _
    $region25: #{mlp_forward.1} parent=1 // pred_fallthru
      _
    %385 = vsyncpa [#allocation3], 1

</llo_original>
